<compile_context>
chip_gen: v7x
topology: tpu7x:2x2x1
jax: 0.10.0
libtpu: 0.0.40
codegen_flags: <defaults>
</compile_context>

<pallas_src>
import math
import functools

import jax
import jax.numpy as jnp
from jax.experimental import pallas as pl
from jax.experimental.pallas import tpu as pltpu


def _arcface_kernel(flag_ref, x_ref, w_ref, label_ref, out_ref, *,
                    s, s_cos_m, s_sin_m, th, s_mm, easy_margin, tile_n):
    j = pl.program_id(0)          # class tile (outer axis)
    i = pl.program_id(1)          # batch tile (inner axis)

    # cosine = normalize(x) @ normalize(W).T ; operands are pre-normalized and
    # pre-cast in the wrapper; W is feature-major (D, tn) so this is a plain
    # MXU matmul (no transposed operand), f32 accumulation.
    cosine = jax.lax.dot_general(
        x_ref[...], w_ref[...], (((1,), (0,)), ((), ())),
        preferred_element_type=jnp.float32)              # (tb, tn) f32
    cosine_s = cosine * s

    # Scalar-prefetched flag: does this (class tile, batch tile) pair contain
    # any label?  If not, skip the VALU/EUP-heavy margin epilogue entirely.
    hit = flag_ref[j * pl.num_programs(1) + i] != 0

    @pl.when(jnp.logical_not(hit))
    def _():
        out_ref[...] = cosine_s

    @pl.when(hit)
    def _():
        # Additive angular margin: s * cos(theta + m).  Clamp 1 - cos^2 so
        # rounding can't push it negative (NaN in sqrt).
        sine = jnp.sqrt(jnp.clip(1.0 - cosine * cosine, 0.0, 1.0))
        phi_s = cosine * s_cos_m - sine * s_sin_m
        if easy_margin:
            phi_s = jnp.where(cosine > 0.0, phi_s, cosine_s)
        else:
            phi_s = jnp.where(cosine > th, phi_s, cosine_s - s_mm)
        # Global class index of each output column in this class tile.
        classes = j * tile_n + jax.lax.broadcasted_iota(
            jnp.int32, cosine.shape, 1)
        out_ref[...] = jnp.where(classes == label_ref[...], phi_s, cosine_s)


def _round_up(x, m):
    return (x + m - 1) // m * m


def arcface_forward(x, weight, label, *, s=64.0, m=0.5, easy_margin=False,
                    block_b=128, block_n=2048, matmul_dtype=jnp.bfloat16):
    """x: (B, in_features) f32, weight: (out_features, in_features) f32,
    label: (B,) int32.  Returns (B, out_features) f32 ArcFace logits."""
    B, D = x.shape
    N, D2 = weight.shape
    assert D == D2

    s_cos_m = s * math.cos(m)
    s_sin_m = s * math.sin(m)
    th = math.cos(math.pi - m)
    s_mm = s * math.sin(math.pi - m) * m

    # Hardware-aligned tiles: class (lane) dim in multiples of 128, batch
    # (sublane) dim in multiples of 8.  Feature dim padded to 256 for full
    # K-occupancy of the 256-wide MXU on v6e/v7x (128 is enough on v5e).
    block_b = _round_up(block_b, 8)
    block_n = _round_up(block_n, 128)
    tb = min(block_b, _round_up(B, 8))
    tn = min(block_n, _round_up(N, 128))
    B_pad = _round_up(B, tb)
    N_pad = _round_up(N, tn)
    D_pad = _round_up(D, 256)

    # L2-normalize ONCE in the wrapper (f32 math), then cast to the MXU
    # streaming dtype.  Zero padding is exact for norms and dot products.
    x32 = x.astype(jnp.float32)
    xn = x32 * jax.lax.rsqrt(
        jnp.maximum(jnp.sum(x32 * x32, axis=1, keepdims=True), 1e-24))
    w32 = weight.astype(jnp.float32)
    wn = w32 * jax.lax.rsqrt(
        jnp.maximum(jnp.sum(w32 * w32, axis=1, keepdims=True), 1e-24))

    xn_p = jnp.pad(xn, ((0, B_pad - B), (0, D_pad - D))).astype(matmul_dtype)
    # Feature-major weight layout: lane-dense along classes, no in-kernel
    # transpose on the MXU path.
    wn_p = jnp.pad(wn, ((0, N_pad - N), (0, D_pad - D))).T.astype(matmul_dtype)
    label_p = jnp.pad(label.astype(jnp.int32), ((0, B_pad - B),),
                      constant_values=-1).reshape(B_pad, 1)

    nb = B_pad // tb
    nc = N_pad // tn

    # (nc, nb) label-hit flags, flattened to 1-D (cheap SMEM residency).
    lbl = label_p[:, 0]
    lbl_tiles = jnp.where(lbl >= 0, lbl // tn, -1).reshape(nb, tb)
    flags = jnp.any(
        lbl_tiles[None, :, :] == jnp.arange(nc, dtype=jnp.int32)[:, None, None],
        axis=-1).astype(jnp.int32).reshape(-1)           # (nc * nb,)

    kernel = functools.partial(
        _arcface_kernel,
        s=s, s_cos_m=s_cos_m, s_sin_m=s_sin_m, th=th, s_mm=s_mm,
        easy_margin=easy_margin, tile_n=tn,
    )

    # Class axis OUTER, batch axis INNER: the weight tile index (0, j) is
    # constant across the inner loop, so Pallas keeps it resident and DMAs
    # each W tile exactly once.  Class axis is 'parallel' for megacore (v7x).
    grid = (nc, nb)

    out = pl.pallas_call(
        kernel,
        out_shape=jax.ShapeDtypeStruct((B_pad, N_pad), jnp.float32),
        grid_spec=pltpu.PrefetchScalarGridSpec(
            num_scalar_prefetch=1,                      # label-hit flags -> SMEM
            grid=grid,
            in_specs=[
                pl.BlockSpec((tb, D_pad), lambda j, i, flags: (i, 0)),  # xn
                pl.BlockSpec((D_pad, tn), lambda j, i, flags: (0, j)),  # wn (resident over i)
                pl.BlockSpec((tb, 1), lambda j, i, flags: (i, 0)),      # labels
            ],
            out_specs=pl.BlockSpec((tb, tn), lambda j, i, flags: (i, j)),
        ),
        compiler_params=pltpu.CompilerParams(
            dimension_semantics=("parallel", "arbitrary"),
            # Working set (2x bf16 W tile + 2x f32 out tile + 2x bf16 x tile)
            # is ~6.5 MiB at tn=2048, D_pad=512 -- well under v7x's 64 MiB.
            vmem_limit_bytes=48 * 1024 * 1024,
        ),
    )(flags, xn_p, wn_p, label_p)

    return out[:B, :N]


def _xavier_uniform(key, shape, dtype=jnp.float32):
    # matches torch nn.init.xavier_uniform_ for a 2-D (fan_out, fan_in) weight
    fan_out, fan_in = shape
    limit = math.sqrt(6.0 / (fan_in + fan_out))
    return jax.random.uniform(key, shape, dtype=dtype, minval=-limit, maxval=limit)


def arcface_reference(x, weight, label, *, s=64.0, m=0.5, easy_margin=False):
    """Pure-JAX f32 reference for correctness checking."""
    cos_m, sin_m = math.cos(m), math.sin(m)
    th = math.cos(math.pi - m)
    mm = math.sin(math.pi - m) * m
    xn = x / jnp.maximum(jnp.linalg.norm(x, axis=1, keepdims=True), 1e-12)
    wn = weight / jnp.maximum(jnp.linalg.norm(weight, axis=1, keepdims=True), 1e-12)
    cosine = jnp.dot(xn, wn.T, precision=jax.lax.Precision.HIGHEST)
    sine = jnp.sqrt(jnp.clip(1.0 - cosine ** 2, 0.0, 1.0))
    phi = cosine * cos_m - sine * sin_m
    if easy_margin:
        phi = jnp.where(cosine > 0, phi, cosine)
    else:
        phi = jnp.where(cosine > th, phi, cosine - mm)
    one_hot = jax.nn.one_hot(label, cosine.shape[1], dtype=cosine.dtype)
    return s * (one_hot * phi + (1.0 - one_hot) * cosine)


if __name__ == "__main__":
    key = jax.random.PRNGKey(0)
    kx, kw, kl, kx2, kw2, kl2 = jax.random.split(key, 6)

    # Case 1: small shapes consistent with ArcFace(in_features, out_features).
    B, Din, Dout = 8, 32, 128
    x = jax.random.normal(kx, (B, Din), dtype=jnp.float32)
    weight = _xavier_uniform(kw, (Dout, Din))
    label = jax.random.randint(kl, (B,), 0, Dout, dtype=jnp.int32)
    ref = arcface_reference(x, weight, label, s=64.0, m=0.5, easy_margin=False)

    # 1a) f32 MXU path -- tight tolerance check of the kernel logic.
    out_f32 = jax.block_until_ready(
        arcface_forward(x, weight, label, s=64.0, m=0.5, easy_margin=False,
                        matmul_dtype=jnp.float32))
    assert out_f32.shape == (B, Dout)
    assert jnp.allclose(out_f32, ref, atol=1e-2, rtol=1e-3), (
        float(jnp.max(jnp.abs(out_f32 - ref))))

    # 1b) Default bf16-stream / f32-accumulate MXU path (perf config) --
    #     looser tolerance consistent with bf16 rounding scaled by s=64.
    out_bf16 = jax.block_until_ready(
        arcface_forward(x, weight, label, s=64.0, m=0.5, easy_margin=False))
    assert out_bf16.shape == (B, Dout)
    assert jnp.allclose(out_bf16, ref, atol=0.5, rtol=5e-2), (
        float(jnp.max(jnp.abs(out_bf16 - ref))))

    # Case 2: multi-tile grid (2 batch tiles x 3 class tiles).  Labels are
    # restricted to the first class tile so the epilogue-skip (no-hit) path is
    # exercised, plus non-multiple-of-128 N/D padding + slicing.
    B2, Din2, Dout2 = 16, 40, 300
    x2 = jax.random.normal(kx2, (B2, Din2), dtype=jnp.float32)
    w2 = _xavier_uniform(kw2, (Dout2, Din2))
    label2 = jax.random.randint(kl2, (B2,), 0, 100, dtype=jnp.int32)
    ref2 = arcface_reference(x2, w2, label2, s=64.0, m=0.5, easy_margin=False)
    out2 = jax.block_until_ready(
        arcface_forward(x2, w2, label2, s=64.0, m=0.5, easy_margin=False,
                        block_b=8, block_n=128, matmul_dtype=jnp.float32))
    assert out2.shape == (B2, Dout2)
    assert jnp.allclose(out2, ref2, atol=1e-2, rtol=1e-3), (
        float(jnp.max(jnp.abs(out2 - ref2))))

    print("KERNEL_OK")
</pallas_src>

<mosaic_0001>
module attributes {stable_mosaic.version = 11 : i64} {
  func.func @_arcface_kernel(%arg0: i32, %arg1: i32, %arg2: memref<1xi32, #tpu.memory_space<smem>>, %arg3: memref<8x256xf32, #tpu.memory_space<vmem>>, %arg4: memref<256x128xf32, #tpu.memory_space<vmem>>, %arg5: memref<8x1xi32, #tpu.memory_space<vmem>>, %arg6: memref<8x128xf32, #tpu.memory_space<vmem>>) attributes {dimension_semantics = [#tpu.dimension_semantics<parallel>, #tpu.dimension_semantics<arbitrary>], iteration_bounds = array<i64: 1, 1>, scalar_prefetch = 1 : i64, scratch_operands = 0 : i64, tpu.core_type = #tpu.core_type<tc>, window_params = [{transform_indices = @transform_0, window_bounds = array<i64: 8, 256>}, {transform_indices = @transform_1, window_bounds = array<i64: 256, 128>}, {transform_indices = @transform_2, window_bounds = array<i64: 8, 1>}, {transform_indices = @transform_3, window_bounds = array<i64: 8, 128>}]} {
    %c0 = arith.constant 0 : index
    %c0_0 = arith.constant 0 : index
    %0 = vector.load %arg3[%c0, %c0_0] : memref<8x256xf32, #tpu.memory_space<vmem>>, vector<8x256xf32>
    %c0_1 = arith.constant 0 : index
    %c0_2 = arith.constant 0 : index
    %1 = vector.load %arg4[%c0_1, %c0_2] : memref<256x128xf32, #tpu.memory_space<vmem>>, vector<256x128xf32>
    %cst = arith.constant dense<0.000000e+00> : vector<8x128xf32>
    %2 = tpu.matmul %0, %1, %cst {dimension_numbers = #tpu.dot_dimension_numbers<[1], [0], [0], [1], [0, 0, 1, 1], [], []>} : vector<8x256xf32>, vector<256x128xf32>, vector<8x128xf32> -> vector<8x128xf32>
    %cst_3 = arith.constant 6.400000e+01 : f32
    %3 = vector.broadcast %cst_3 : f32 to vector<8x128xf32>
    %4 = arith.mulf %2, %3 : vector<8x128xf32>
    %c1_i32 = arith.constant 1 : i32
    %5 = arith.muli %arg0, %c1_i32 : i32
    %6 = arith.addi %5, %arg1 : i32
    %7 = arith.index_cast %6 : i32 to index
    %8 = memref.load %arg2[%7] : memref<1xi32, #tpu.memory_space<smem>>
    %c0_i32 = arith.constant 0 : i32
    %9 = arith.cmpi ne, %8, %c0_i32 : i32
    %true = arith.constant true
    %10 = arith.xori %9, %true : i1
    %11 = arith.extui %10 : i1 to i32
    %c0_i32_4 = arith.constant 0 : i32
    %12 = arith.cmpi ne, %11, %c0_i32_4 : i32
    scf.if %12 {
      %c0_6 = arith.constant 0 : index
      %c0_7 = arith.constant 0 : index
      %15 = vector.load %arg6[%c0_6, %c0_7] : memref<8x128xf32, #tpu.memory_space<vmem>>, vector<8x128xf32>
      tpu.vector_store %arg6[%c0_6, %c0_7], %4 {strides = array<i32>} : memref<8x128xf32, #tpu.memory_space<vmem>>, vector<8x128xf32>,
    } else {
    }
    %13 = arith.extui %9 : i1 to i32
    %c0_i32_5 = arith.constant 0 : i32
    %14 = arith.cmpi ne, %13, %c0_i32_5 : i32
    scf.if %14 {
      %15 = arith.mulf %2, %2 : vector<8x128xf32>
      %cst_6 = arith.constant 1.000000e+00 : f32
      %16 = vector.broadcast %cst_6 : f32 to vector<8x128xf32>
      %17 = arith.subf %16, %15 : vector<8x128xf32>
      %cst_7 = arith.constant 0.000000e+00 : f32
      %cst_8 = arith.constant 1.000000e+00 : f32
      %18 = vector.broadcast %cst_7 : f32 to vector<8x128xf32>
      %19 = arith.maximumf %18, %17 : vector<8x128xf32>
      %20 = vector.broadcast %cst_8 : f32 to vector<8x128xf32>
      %21 = arith.minimumf %20, %19 : vector<8x128xf32>
      %22 = math.sqrt %21 : vector<8x128xf32>
      %cst_9 = arith.constant 56.1652832 : f32
      %23 = vector.broadcast %cst_9 : f32 to vector<8x128xf32>
      %24 = arith.mulf %2, %23 : vector<8x128xf32>
      %cst_10 = arith.constant 30.6832352 : f32
      %25 = vector.broadcast %cst_10 : f32 to vector<8x128xf32>
      %26 = arith.mulf %22, %25 : vector<8x128xf32>
      %27 = arith.subf %24, %26 : vector<8x128xf32>
      %cst_11 = arith.constant -0.87758255 : f32
      %28 = vector.broadcast %cst_11 : f32 to vector<8x128xf32>
      %29 = arith.cmpf ogt, %2, %28 : vector<8x128xf32>
      %cst_12 = arith.constant 15.3416176 : f32
      %30 = vector.broadcast %cst_12 : f32 to vector<8x128xf32>
      %31 = arith.subf %4, %30 : vector<8x128xf32>
      %32 = arith.select %29, %27, %31 : vector<8x128xi1>, vector<8x128xf32>
      %c128_i32 = arith.constant 128 : i32
      %33 = arith.muli %arg0, %c128_i32 : i32
      %34 = tpu.iota {dimensions = array<i32: 1>} : vector<8x128xi32>
      %35 = vector.broadcast %33 : i32 to vector<8x128xi32>
      %36 = arith.addi %35, %34 : vector<8x128xi32>
      %c0_13 = arith.constant 0 : index
      %c0_14 = arith.constant 0 : index
      %37 = vector.load %arg5[%c0_13, %c0_14] : memref<8x1xi32, #tpu.memory_space<vmem>>, vector<8x1xi32>
      %38 = vector.broadcast %37 : vector<8x1xi32> to vector<8x128xi32>
      %39 = arith.cmpi eq, %36, %38 : vector<8x128xi32>
      %40 = arith.select %39, %32, %4 : vector<8x128xi1>, vector<8x128xf32>
      %c0_15 = arith.constant 0 : index
      %c0_16 = arith.constant 0 : index
      %41 = vector.load %arg6[%c0_15, %c0_16] : memref<8x128xf32, #tpu.memory_space<vmem>>, vector<8x128xf32>
      tpu.vector_store %arg6[%c0_15, %c0_16], %40 {strides = array<i32>} : memref<8x128xf32, #tpu.memory_space<vmem>>, vector<8x128xf32>,
    } else {
    }
    return
  }
  func.func @transform_0(%arg0: i32, %arg1: i32, %arg2: memref<1xi32, #tpu.memory_space<smem>>) -> (i32, i32) {
    %c0_i32 = arith.constant 0 : i32
    %c0_i32_0 = arith.constant 0 : i32
    return %arg1, %c0_i32 : i32, i32
  }
  func.func @transform_1(%arg0: i32, %arg1: i32, %arg2: memref<1xi32, #tpu.memory_space<smem>>) -> (i32, i32) {
    %c0_i32 = arith.constant 0 : i32
    %c0_i32_0 = arith.constant 0 : i32
    return %c0_i32, %arg0 : i32, i32
  }
  func.func @transform_2(%arg0: i32, %arg1: i32, %arg2: memref<1xi32, #tpu.memory_space<smem>>) -> (i32, i32) {
    %c0_i32 = arith.constant 0 : i32
    %c0_i32_0 = arith.constant 0 : i32
    return %arg1, %c0_i32 : i32, i32
  }
  func.func @transform_3(%arg0: i32, %arg1: i32, %arg2: memref<1xi32, #tpu.memory_space<smem>>) -> (i32, i32) {
    %c0_i32 = arith.constant 0 : i32
    return %arg1, %arg0 : i32, i32
  }
}

</mosaic_0001>

<llo_original>
// kernel: tpu_custom_call.1
$region0: #{tpu_custom_call.1}
  #allocation0 [shape = 'u32[]', space=smem, size = 0x4, offset = 0x4, fixed_abs, tag = 'smem constant byte address 0x4 - core index']
  #allocation1 [shape = 'u32[144,128]{1,0:T(1,128)}', space=vmem, size = 0x12000, scoped, tag = 'internal scratch']
  #allocation2 [shape = 's32[1]{0}', space=sflag, size = 0x4, scoped, tag = 'scoped memory for tpu_custom_call.1']
  #allocation3 [shape = 's32[1]{0:T(128)S(6)}', space=smem, size = 0x200, scoped, tag = 'prefetched SMEM operand 0']
  %s0 = inlined_call_operand.<no memory space> [shape: s32[1], index: 0, kind: input, shape index: {}]
  %s1 = inlined_call_operand.hbm [shape: f32[8,256], index: 1, kind: input, shape index: {}]
  %s2 = inlined_call_operand.hbm [shape: f32[256,128], index: 2, kind: input, shape index: {}]
  %s3 = inlined_call_operand.vmem [shape: s32[8,1], index: 3, kind: input, shape index: {}]
  %s4 = inlined_call_operand.hbm [shape: f32[8,128], index: 4, kind: output, shape index: {}]
  %s5 = sld [smem:[#allocation0]]
  $region38: #{tpu_custom_call.1} parent=0
    _
  %s7 = ssub.s32 1, %s5
  %s8 = scalar_select 0, %s7, %s5
  %9 = sst [smem:[#allocation3]] %s0
  $region1: #{tpu_custom_call.1} parent=0
    #allocation4 [shape = 'u8[8192]{0}', space=vmem, size = 0x2000, scoped, tag = 'input window, operand 1, single buffered']
    #allocation5 [shape = 's32[1]{0}', space=sflag, size = 0x4, scoped, tag = 'scoped memory for tpu_custom_call.1']
    #allocation6 [shape = 's32[1]{0}', space=sflag, size = 0x4, scoped, tag = 'scoped memory for tpu_custom_call.1']
    #allocation7 [shape = 'u8[131072]{0}', space=vmem, size = 0x20000, scoped, tag = 'input window, operand 2, single buffered']
    #allocation8 [shape = 's32[1]{0}', space=sflag, size = 0x4, scoped, tag = 'scoped memory for tpu_custom_call.1']
    #allocation9 [shape = 'u8[4096]{0}', space=vmem, size = 0x1000, scoped, tag = 'output window, operand 0, single buffered']
    %10 = vsyncpa [#allocation5], 0
    %11 = vsyncpa [#allocation8], 0
    %12 = vsyncpa [#allocation6], 0
    // Predicated region
    $region2: #{tpu_custom_call.1} parent=1 // pred_check
      _
    $region3: #{tpu_custom_call.1} parent=1 // pred_check_branch
      %14 = sbr.rel (0) target = $region5
    $region4: #{tpu_custom_call.1} parent=1 // pred_region
      %s16 = ssub.s32 256, 256
      %17 = vsyncadd [#allocation5], %s16
      %s19 = sshll.u32 [#allocation4], 4
      %s20 = int_to_ptr.vmem [resolvable:$true] %s19
      %22 = dma.hbm_to_vmem [thread:$0]  %s1, 256, %s20, [#allocation5]
    $region5: #{tpu_custom_call.1} parent=1 // pred_fallthru
      _
    // Predicated region
    $region6: #{tpu_custom_call.1} parent=1 // pred_check
      _
    $region7: #{tpu_custom_call.1} parent=1 // pred_check_branch
      %24 = sbr.rel (0) target = $region9
    $region8: #{tpu_custom_call.1} parent=1 // pred_region
      %s26 = ssub.s32 4096, 4096
      %27 = vsyncadd [#allocation8], %s26
      %s28 = sshll.u32 [#allocation7], 4
      %s29 = int_to_ptr.vmem [resolvable:$true] %s28
      %34 = dma.hbm_to_vmem [thread:$0]  %s2, 4096, %s29, [#allocation8], 128, 128, 8
    $region9: #{tpu_custom_call.1} parent=1 // pred_fallthru
      _
    // Predicated region
    $region10: #{tpu_custom_call.1} parent=1 // pred_check
      _
    $region11: #{tpu_custom_call.1} parent=1 // pred_check_branch
      %36 = sbr.rel (0) target = $region13
    $region12: #{tpu_custom_call.1} parent=1 // pred_region
      _
    $region13: #{tpu_custom_call.1} parent=1 // pred_fallthru
      _
    // Predicated region
    $region14: #{tpu_custom_call.1} parent=1 // pred_check
      _
    $region15: #{tpu_custom_call.1} parent=1 // pred_check_branch
      %38 = sbr.rel (0) target = $region17
    $region16: #{tpu_custom_call.1} parent=1 // pred_region
      %39 = dma.done [#allocation5], 256
    $region17: #{tpu_custom_call.1} parent=1 // pred_fallthru
      _
    // Predicated region
    $region18: #{tpu_custom_call.1} parent=1 // pred_check
      _
    $region19: #{tpu_custom_call.1} parent=1 // pred_check_branch
      %41 = sbr.rel (0) target = $region21
    $region20: #{tpu_custom_call.1} parent=1 // pred_region
      %42 = dma.done [#allocation8], 4096
    $region21: #{tpu_custom_call.1} parent=1 // pred_fallthru
      _
    %v43 = vld [vmem:[#allocation4] sm:$0xff]
    %v44 = vld [vmem:[#allocation4 + $0x8] sm:$0xff]
    %v45 = vld [vmem:[#allocation7] sm:$0xff]
    %v46 = vld [vmem:[#allocation7 + $0x8] sm:$0xff]
    %v47 = vld [vmem:[#allocation7 + $0x10] sm:$0xff]
    %v48 = vld [vmem:[#allocation7 + $0x18] sm:$0xff]
    %v49 = vld [vmem:[#allocation7 + $0x20] sm:$0xff]
    %v50 = vld [vmem:[#allocation7 + $0x28] sm:$0xff]
    %v51 = vld [vmem:[#allocation7 + $0x30] sm:$0xff]
    %v52 = vld [vmem:[#allocation7 + $0x38] sm:$0xff]
    %v53 = vld [vmem:[#allocation7 + $0x40] sm:$0xff]
    %v54 = vld [vmem:[#allocation7 + $0x48] sm:$0xff]
    %v55 = vld [vmem:[#allocation7 + $0x50] sm:$0xff]
    %v56 = vld [vmem:[#allocation7 + $0x58] sm:$0xff]
    %v57 = vld [vmem:[#allocation7 + $0x60] sm:$0xff]
    %v58 = vld [vmem:[#allocation7 + $0x68] sm:$0xff]
    %v59 = vld [vmem:[#allocation7 + $0x70] sm:$0xff]
    %v60 = vld [vmem:[#allocation7 + $0x78] sm:$0xff]
    %v61 = vld [vmem:[#allocation7 + $0x80] sm:$0xff]
    %v62 = vld [vmem:[#allocation7 + $0x88] sm:$0xff]
    %v63 = vld [vmem:[#allocation7 + $0x90] sm:$0xff]
    %v64 = vld [vmem:[#allocation7 + $0x98] sm:$0xff]
    %v65 = vld [vmem:[#allocation7 + $0xa0] sm:$0xff]
    %v66 = vld [vmem:[#allocation7 + $0xa8] sm:$0xff]
    %v67 = vld [vmem:[#allocation7 + $0xb0] sm:$0xff]
    %v68 = vld [vmem:[#allocation7 + $0xb8] sm:$0xff]
    %v69 = vld [vmem:[#allocation7 + $0xc0] sm:$0xff]
    %v70 = vld [vmem:[#allocation7 + $0xc8] sm:$0xff]
    %v71 = vld [vmem:[#allocation7 + $0xd0] sm:$0xff]
    %v72 = vld [vmem:[#allocation7 + $0xd8] sm:$0xff]
    %v73 = vld [vmem:[#allocation7 + $0xe0] sm:$0xff]
    %v74 = vld [vmem:[#allocation7 + $0xe8] sm:$0xff]
    %v75 = vld [vmem:[#allocation7 + $0xf0] sm:$0xff]
    %v76 = vld [vmem:[#allocation7 + $0xf8] sm:$0xff]
    %77 = vmatprep.subr.mxu0 0.0
    %78 = vmatpush1.msra.mxu0 %v45
    %79 = vmatprep.subr.mxu0 0.0
    %80 = vmatpush1.msra.mxu0 %v46
    %81 = vmatprep.subr.mxu0 0.0
    %82 = vmatpush1.msra.mxu0 %v47
    %83 = vmatprep.subr.mxu0 0.0
    %84 = vmatpush1.msra.mxu0 %v48
    %85 = vmatprep.subr.mxu0 0.0
    %86 = vmatpush1.msra.mxu0 %v49
    %87 = vmatprep.subr.mxu0 0.0
    %88 = vmatpush1.msra.mxu0 %v50
    %89 = vmatprep.subr.mxu0 0.0
    %90 = vmatpush1.msra.mxu0 %v51
    %91 = vmatprep.subr.mxu0 0.0
    %92 = vmatpush1.msra.mxu0 %v52
    %93 = vmatprep.subr.mxu0 0.0
    %94 = vmatpush1.msra.mxu0 %v53
    %95 = vmatprep.subr.mxu0 0.0
    %96 = vmatpush1.msra.mxu0 %v54
    %97 = vmatprep.subr.mxu0 0.0
    %98 = vmatpush1.msra.mxu0 %v55
    %99 = vmatprep.subr.mxu0 0.0
    %100 = vmatpush1.msra.mxu0 %v56
    %101 = vmatprep.subr.mxu0 0.0
    %102 = vmatpush1.msra.mxu0 %v57
    %103 = vmatprep.subr.mxu0 0.0
    %104 = vmatpush1.msra.mxu0 %v58
    %105 = vmatprep.subr.mxu0 0.0
    %106 = vmatpush1.msra.mxu0 %v59
    %107 = vmatprep.subr.mxu0 0.0
    %108 = vmatpush1.msra.mxu0 %v60
    %109 = vmatprep.subr.mxu0 0.0
    %110 = vmatpush1.msra.mxu0 %v61
    %111 = vmatprep.subr.mxu0 0.0
    %112 = vmatpush1.msra.mxu0 %v62
    %113 = vmatprep.subr.mxu0 0.0
    %114 = vmatpush1.msra.mxu0 %v63
    %115 = vmatprep.subr.mxu0 0.0
    %116 = vmatpush1.msra.mxu0 %v64
    %117 = vmatprep.subr.mxu0 0.0
    %118 = vmatpush1.msra.mxu0 %v65
    %119 = vmatprep.subr.mxu0 0.0
    %120 = vmatpush1.msra.mxu0 %v66
    %121 = vmatprep.subr.mxu0 0.0
    %122 = vmatpush1.msra.mxu0 %v67
    %123 = vmatprep.subr.mxu0 0.0
    %124 = vmatpush1.msra.mxu0 %v68
    %125 = vmatprep.subr.mxu0 0.0
    %126 = vmatpush1.msra.mxu0 %v69
    %127 = vmatprep.subr.mxu0 0.0
    %128 = vmatpush1.msra.mxu0 %v70
    %129 = vmatprep.subr.mxu0 0.0
    %130 = vmatpush1.msra.mxu0 %v71
    %131 = vmatprep.subr.mxu0 0.0
    %132 = vmatpush1.msra.mxu0 %v72
    %133 = vmatprep.subr.mxu0 0.0
    %134 = vmatpush1.msra.mxu0 %v73
    %135 = vmatprep.subr.mxu0 0.0
    %136 = vmatpush1.msra.mxu0 %v74
    %137 = vmatprep.subr.mxu0 0.0
    %138 = vmatpush1.msra.mxu0 %v75
    %139 = vmatprep.subr.mxu0 0.0
    %140 = vmatpush1.msra.mxu0 %v76
    %141 = vmatprep.mubr.f32.mxu0 %v44
    %142 = vmatmul.mubr.f32.gmra.mrb[0].mxu0 %v43
    %v143 = vpop.f32.mrb[0].mxu0
    %v144 = vadd.f32 0.0, %v143
    %v145 = vpop.f32.mrb[0].mxu0
    %146 = vdwg.mxu0
    %v147 = vmul.f32 %v144, 64.0
    %s148 = sadd.s32 0, 0
    %s149 = sld [smem:[#allocation3 + %s148]]
    %p150 = scmp.ne.s32.totalorder %s149, 0
    %p151 = scmp.eq.s32.totalorder %s149, 0
    // Predicated region
    $region22: #{tpu_custom_call.1} parent=1 // pred_check
      %p152 = pneg %p151
    $region23: #{tpu_custom_call.1} parent=1 // pred_check_branch
      %154 = sbr.rel (%p152) target = $region25
    $region24: #{tpu_custom_call.1} parent=1 // pred_region
      %155 = vst [vmem:[#allocation9] sm:$0xff] %v147
    $region25: #{tpu_custom_call.1} parent=1 // pred_fallthru
      _
    // Predicated region
    $region26: #{tpu_custom_call.1} parent=1 // pred_check
      %p156 = pneg %p150
    $region27: #{tpu_custom_call.1} parent=1 // pred_check_branch
      %158 = sbr.rel (%p156) target = $region29
    $region28: #{tpu_custom_call.1} parent=1 // pred_region
      %v159 = vmul.f32 %v144, %v144
      %v160 = vsub.f32 1.0, %v159
      %v161 = vmax.f32 %v160, 0.0
      %v162 = vmin.f32 %v161, 1.0
      %v163 = vrsqrt.pop %v162
      %v164 = vmul.f32 %v162, %v163
      %vm165 = vcmp.eq.f32.partialorder %v162, inf
      %v166 = vsel %vm165, %v162, %v164
      %vm167 = vcmp.eq.f32.partialorder %v162, 0.0
      %v168 = vand.u32 %v162, 2147483648
      %v169 = vsel %vm167, %v168, %v166
      %v170 = vmul.f32 %v144, 56.165283
      %v171 = vmul.f32 %v169, 30.683235
      %v172 = vsub.f32 %v170, %v171
      %vm173 = vcmp.gt.f32.partialorder %v144, -0.87758255
      %v174 = vsub.f32 %v147, 15.341618
      %v175 = vsel %vm173, %v172, %v174
      %s176 = smul.u32 0, 128
      %v177 = vlaneseq
      %v178 = vand.u32 %v177, 127
      %v179 = vstv %s176
      %v180 = vadd.s32 %v179, %v178
      %v181 = vld [vmem:[%s3] sm:$0xff]
      %182 = vset.pattern.permute.xlu0 0
      %183 = vperm.xlu0 %182, %v181
      %v184 = vpop.permute.xlu0 %183
      %vm185 = vcmp.eq.s32.totalorder %v180, %v184
      %v186 = vsel %vm185, %v175, %v147
      %187 = vst [vmem:[#allocation9] sm:$0xff] %v186
    $region29: #{tpu_custom_call.1} parent=1 // pred_fallthru
      _
    // Predicated region
    $region30: #{tpu_custom_call.1} parent=1 // pred_check
      _
    $region31: #{tpu_custom_call.1} parent=1 // pred_check_branch
      %189 = sbr.rel (0) target = $region33
    $region32: #{tpu_custom_call.1} parent=1 // pred_region
      %s191 = ssub.s32 128, 128
      %192 = vsyncadd [#allocation6], %s191
      %s194 = sshll.u32 [#allocation9], 4
      %s195 = int_to_ptr.vmem [resolvable:$true] %s194
      %197 = dma.vmem_to_hbm [thread:$0]  %s195, 128, %s4, [#allocation6]
    $region33: #{tpu_custom_call.1} parent=1 // pred_fallthru
      _
    // Predicated region
    $region34: #{tpu_custom_call.1} parent=1 // pred_check
      _
    $region35: #{tpu_custom_call.1} parent=1 // pred_check_branch
      %199 = sbr.rel (0) target = $region37
    $region36: #{tpu_custom_call.1} parent=1 // pred_region
      %200 = dma.done [#allocation6], 128
    $region37: #{tpu_custom_call.1} parent=1 // pred_fallthru
      _
    %201 = vsyncpa [#allocation5], 1
    %202 = vsyncpa [#allocation8], 1
    %203 = vsyncpa [#allocation6], 1

</llo_original>
